<compile_context>
chip_gen: v6e
topology: v6e:2x2x1
jax: 0.10.0
libtpu: 0.0.40
codegen_flags: <defaults>
</compile_context>

<pallas_src>
import functools

import jax
import jax.numpy as jnp
from jax.experimental import pallas as pl
from jax.experimental.pallas import tpu as pltpu


def _round_up(x, m):
    return (x + m - 1) // m * m


def _asm2vec_loss_kernel(ctx_ref, vf_ref, r_ref, out_ref, *, batch_valid):
    # ctx_ref: [TB, 4*2E]  packed pairs [e0|e1], [e3|e2], [e0|e4], [e3|e5]
    # vf_ref : [TB, 2E]    function embedding
    # r_ref  : [TB, S, 2E] output embeddings for cat([pos, neg], 1)
    # out_ref: [1, 128]    per-tile partial loss sum (replicated over lanes)
    two_e = vf_ref.shape[1]
    tb = vf_ref.shape[0]

    ctx = ctx_ref[...]
    # v_prev + v_next == 0.5 * (pair0 + pair1 + pair2 + pair3)  (see header)
    v_ctx = (ctx[:, 0:two_e] + ctx[:, two_e:2 * two_e]
             + ctx[:, 2 * two_e:3 * two_e] + ctx[:, 3 * two_e:4 * two_e]) * 0.5
    v = (vf_ref[...] + v_ctx) * (1.0 / 3.0)                     # [TB, 2E]

    # bmm(r, v[..., None]).squeeze() -> elementwise mul + lane reduce.
    pred = jnp.sum(r_ref[...] * v[:, None, :], axis=-1)         # [TB, S]

    # Stable BCE-with-logits with label = [1, 0, ..., 0]:
    #   per-row loss sum = sum_s softplus(pred[:, s]) - pred[:, 0]
    softplus = jnp.maximum(pred, 0.0) + jnp.log(1.0 + jnp.exp(-jnp.abs(pred)))
    row_loss = jnp.sum(softplus, axis=-1, keepdims=True) - pred[:, 0:1]  # [TB,1]

    # Mask batch-padding rows.
    row = (jax.lax.broadcasted_iota(jnp.int32, (tb, 1), 0)
           + pl.program_id(0) * tb)
    valid = (row < batch_valid).astype(jnp.float32)

    tile_sum = jnp.sum(row_loss * valid, axis=0, keepdims=True)  # [1, 1]
    out_ref[...] = jnp.broadcast_to(tile_sum, (1, 128))


def asm2vec_loss_pallas(ctx, v_f, r, *, batch_valid, tile_b):
    b_pad, eight_e = ctx.shape
    s, two_e = r.shape[1], r.shape[2]
    num_tiles = b_pad // tile_b

    kernel = functools.partial(_asm2vec_loss_kernel, batch_valid=batch_valid)
    partial = pl.pallas_call(
        kernel,
        out_shape=jax.ShapeDtypeStruct((num_tiles, 128), jnp.float32),
        grid=(num_tiles,),
        in_specs=[
            pl.BlockSpec((tile_b, eight_e), lambda i: (i, 0)),
            pl.BlockSpec((tile_b, two_e), lambda i: (i, 0)),
            pl.BlockSpec((tile_b, s, two_e), lambda i: (i, 0, 0)),
        ],
        out_specs=pl.BlockSpec((1, 128), lambda i: (i, 0)),
        compiler_params=pltpu.CompilerParams(
            dimension_semantics=("parallel",)),
    )(ctx, v_f, r)

    return jnp.sum(partial[:, 0]) / (batch_valid * s)


def asm2vec_forward(params, inp, pos, neg, *, tile_b=256):
    """Equivalent of ASM2VEC.forward(inp, pos, neg) -> scalar loss."""
    embeddings, embeddings_f, embeddings_r = params
    b = inp.shape[0]
    e_dim = embeddings.shape[1]

    tb = min(tile_b, _round_up(b, 8))
    b_pad = _round_up(b, tb)
    if b_pad != b:
        padn = b_pad - b
        inp = jnp.pad(inp, ((0, padn), (0, 0)))
        pos = jnp.pad(pos, ((0, padn), (0, 0)))
        neg = jnp.pad(neg, ((0, padn), (0, 0)))

    # Lane-dense packed context gather: inp token columns for the pairs
    #   [e0|e1], [e3|e2], [e0|e4], [e3|e5]   (e_k = embeddings(inp[:, 1+k]))
    pair_cols = jnp.array([1, 2, 4, 3, 1, 5, 4, 6], dtype=jnp.int32)
    ctx = embeddings[inp[:, pair_cols]].reshape(b_pad, 8 * e_dim)   # [Bp, 8E]
    v_f = embeddings_f[inp[:, 0]]                                   # [Bp, 2E]
    tokens = jnp.concatenate([pos, neg], axis=1)                    # [Bp, S]
    r = embeddings_r[tokens]                                        # [Bp, S, 2E]

    return asm2vec_loss_pallas(ctx, v_f, r, batch_valid=b, tile_b=tb)


def init_params(key, vocab_size, function_size, embedding_size):
    k1, k2 = jax.random.split(key)
    # (torch.rand(V, E) - 0.5) / E / 2
    embeddings = (jax.random.uniform(k1, (vocab_size, embedding_size),
                                     dtype=jnp.float32) - 0.5) / embedding_size / 2
    embeddings_f = (jax.random.uniform(k2, (function_size, 2 * embedding_size),
                                       dtype=jnp.float32) - 0.5) / embedding_size / 2
    embeddings_r = jnp.zeros((vocab_size, 2 * embedding_size), jnp.float32)
    return embeddings, embeddings_f, embeddings_r


def _reference_loss(params, inp, pos, neg):
    """Pure-JAX reference following the original module literally."""
    embeddings, embeddings_f, embeddings_r = params
    e = embeddings[inp[:, 1:]]
    v_f = embeddings_f[inp[:, 0]]
    v_prev = jnp.concatenate([e[:, 0], (e[:, 1] + e[:, 2]) / 2], axis=1)
    v_next = jnp.concatenate([e[:, 3], (e[:, 4] + e[:, 5]) / 2], axis=1)
    v = (v_f + v_prev + v_next) / 3.0
    r = embeddings_r[jnp.concatenate([pos, neg], axis=1)]
    pred = jnp.einsum('bsd,bd->bs', r, v)
    label = jnp.concatenate(
        [jnp.ones((inp.shape[0], 1)), jnp.zeros((inp.shape[0], neg.shape[1]))],
        axis=1)
    return jnp.mean(jax.nn.softplus(pred) - label * pred)


if __name__ == "__main__":
    vocab_size = 64
    function_size = 16
    embedding_size = 64          # 2E = 128 -> lane-aligned
    batch = 8
    n_neg = 7                    # S = 1 + 7 = 8

    key = jax.random.PRNGKey(0)
    kp, kr, ki, kt, kpos, kneg = jax.random.split(key, 6)

    params = init_params(kp, vocab_size, function_size, embedding_size)
    # Give the (zero-initialized) output table small random values so the
    # correctness check exercises the dot-product / BCE path.
    embeddings, embeddings_f, _ = params
    embeddings_r = 0.1 * jax.random.normal(
        kr, (vocab_size, 2 * embedding_size), dtype=jnp.float32)
    params = (embeddings, embeddings_f, embeddings_r)

    inp_f = jax.random.randint(ki, (batch, 1), 0, function_size, dtype=jnp.int32)
    inp_tok = jax.random.randint(kt, (batch, 6), 0, vocab_size, dtype=jnp.int32)
    inp = jnp.concatenate([inp_f, inp_tok], axis=1)        # [B, 7]
    pos = jax.random.randint(kpos, (batch, 1), 0, vocab_size, dtype=jnp.int32)
    neg = jax.random.randint(kneg, (batch, n_neg), 0, vocab_size, dtype=jnp.int32)

    loss = jax.jit(asm2vec_forward)(params, inp, pos, neg)
    jax.block_until_ready(loss)

    ref = _reference_loss(params, inp, pos, neg)
    assert jnp.isfinite(loss)
    assert jnp.allclose(loss, ref, rtol=1e-5, atol=1e-5), (loss, ref)
    print("KERNEL_OK")
</pallas_src>

<mosaic_0001>
module attributes {stable_mosaic.version = 11 : i64} {
  func.func @_asm2vec_loss_kernel(%arg0: i32, %arg1: memref<8x512xf32, #tpu.memory_space<vmem>>, %arg2: memref<8x128xf32, #tpu.memory_space<vmem>>, %arg3: memref<8x8x128xf32, #tpu.memory_space<vmem>>, %arg4: memref<1x128xf32, #tpu.memory_space<vmem>>) attributes {dimension_semantics = [#tpu.dimension_semantics<parallel>], iteration_bounds = array<i64: 1>, scalar_prefetch = 0 : i64, scratch_operands = 0 : i64, tpu.core_type = #tpu.core_type<tc>, window_params = [{transform_indices = @transform_0, window_bounds = array<i64: 8, 512>}, {transform_indices = @transform_1, window_bounds = array<i64: 8, 128>}, {transform_indices = @transform_2, window_bounds = array<i64: 8, 8, 128>}, {transform_indices = @transform_3, window_bounds = array<i64: 1, 128>}]} {
    %c0 = arith.constant 0 : index
    %c0_0 = arith.constant 0 : index
    %0 = vector.load %arg1[%c0, %c0_0] : memref<8x512xf32, #tpu.memory_space<vmem>>, vector<8x512xf32>
    %1 = vector.extract_strided_slice %0 {offsets = [0, 0], sizes = [8, 128], strides = [1, 1]} : vector<8x512xf32> to vector<8x128xf32>
    %2 = vector.extract_strided_slice %0 {offsets = [0, 128], sizes = [8, 128], strides = [1, 1]} : vector<8x512xf32> to vector<8x128xf32>
    %3 = arith.addf %1, %2 : vector<8x128xf32>
    %4 = vector.extract_strided_slice %0 {offsets = [0, 256], sizes = [8, 128], strides = [1, 1]} : vector<8x512xf32> to vector<8x128xf32>
    %5 = arith.addf %3, %4 : vector<8x128xf32>
    %6 = vector.extract_strided_slice %0 {offsets = [0, 384], sizes = [8, 128], strides = [1, 1]} : vector<8x512xf32> to vector<8x128xf32>
    %7 = arith.addf %5, %6 : vector<8x128xf32>
    %cst = arith.constant 5.000000e-01 : f32
    %8 = vector.broadcast %cst : f32 to vector<8x128xf32>
    %9 = arith.mulf %7, %8 : vector<8x128xf32>
    %c0_1 = arith.constant 0 : index
    %c0_2 = arith.constant 0 : index
    %10 = vector.load %arg2[%c0_1, %c0_2] : memref<8x128xf32, #tpu.memory_space<vmem>>, vector<8x128xf32>
    %11 = arith.addf %10, %9 : vector<8x128xf32>
    %cst_3 = arith.constant 0.333333343 : f32
    %12 = vector.broadcast %cst_3 : f32 to vector<8x128xf32>
    %13 = arith.mulf %11, %12 : vector<8x128xf32>
    %c0_4 = arith.constant 0 : index
    %c0_5 = arith.constant 0 : index
    %c0_6 = arith.constant 0 : index
    %14 = vector.load %arg3[%c0_4, %c0_5, %c0_6] : memref<8x8x128xf32, #tpu.memory_space<vmem>>, vector<8x8x128xf32>
    %15 = vector.shape_cast %13 : vector<8x128xf32> to vector<8x1x128xf32>
    %16 = vector.broadcast %15 : vector<8x1x128xf32> to vector<8x8x128xf32>
    %17 = arith.mulf %14, %16 : vector<8x8x128xf32>
    %cst_7 = arith.constant dense<0.000000e+00> : vector<8x8xf32>
    %18 = vector.multi_reduction <add>, %17, %cst_7 [2] : vector<8x8x128xf32> to vector<8x8xf32>
    %cst_8 = arith.constant 0.000000e+00 : f32
    %19 = vector.broadcast %cst_8 : f32 to vector<8x8xf32>
    %20 = arith.maximumf %18, %19 : vector<8x8xf32>
    %21 = math.absf %18 : vector<8x8xf32>
    %cst_9 = arith.constant 0.000000e+00 : f32
    %22 = vector.broadcast %cst_9 : f32 to vector<8x8xf32>
    %23 = arith.subf %22, %21 : vector<8x8xf32>
    %24 = math.exp %23 : vector<8x8xf32>
    %cst_10 = arith.constant 1.000000e+00 : f32
    %25 = vector.broadcast %cst_10 : f32 to vector<8x8xf32>
    %26 = arith.addf %25, %24 : vector<8x8xf32>
    %27 = math.log %26 : vector<8x8xf32>
    %28 = arith.addf %20, %27 : vector<8x8xf32>
    %cst_11 = arith.constant dense<0.000000e+00> : vector<8xf32>
    %29 = vector.multi_reduction <add>, %28, %cst_11 [1] : vector<8x8xf32> to vector<8xf32>
    %30 = vector.shape_cast %29 : vector<8xf32> to vector<8x1xf32>
    %31 = vector.extract_strided_slice %18 {offsets = [0, 0], sizes = [8, 1], strides = [1, 1]} : vector<8x8xf32> to vector<8x1xf32>
    %32 = arith.subf %30, %31 : vector<8x1xf32>
    %33 = tpu.iota {dimensions = array<i32: 0>} : vector<8x1xi32>
    %c8_i32 = arith.constant 8 : i32
    %34 = arith.muli %arg0, %c8_i32 : i32
    %35 = vector.broadcast %34 : i32 to vector<8x1xi32>
    %36 = arith.addi %33, %35 : vector<8x1xi32>
    %c8_i32_12 = arith.constant 8 : i32
    %37 = vector.broadcast %c8_i32_12 : i32 to vector<8x1xi32>
    %38 = arith.cmpi slt, %36, %37 : vector<8x1xi32>
    %39 = arith.extui %38 : vector<8x1xi1> to vector<8x1xi32>
    %40 = arith.sitofp %39 : vector<8x1xi32> to vector<8x1xf32>
    %41 = arith.mulf %32, %40 : vector<8x1xf32>
    %cst_13 = arith.constant dense<0.000000e+00> : vector<1xf32>
    %42 = vector.multi_reduction <add>, %41, %cst_13 [0] : vector<8x1xf32> to vector<1xf32>
    %43 = vector.shape_cast %42 : vector<1xf32> to vector<1x1xf32>
    %44 = vector.shape_cast %43 : vector<1x1xf32> to vector<1x1xf32>
    %45 = vector.broadcast %44 : vector<1x1xf32> to vector<1x128xf32>
    %c0_14 = arith.constant 0 : index
    %c0_15 = arith.constant 0 : index
    %46 = vector.load %arg4[%c0_14, %c0_15] : memref<1x128xf32, #tpu.memory_space<vmem>>, vector<1x128xf32>
    tpu.vector_store %arg4[%c0_14, %c0_15], %45 {strides = array<i32>} : memref<1x128xf32, #tpu.memory_space<vmem>>, vector<1x128xf32>,
    return
  }
  func.func @transform_0(%arg0: i32) -> (i32, i32) {
    %c0_i32 = arith.constant 0 : i32
    %c0_i32_0 = arith.constant 0 : i32
    return %arg0, %c0_i32 : i32, i32
  }
  func.func @transform_1(%arg0: i32) -> (i32, i32) {
    %c0_i32 = arith.constant 0 : i32
    %c0_i32_0 = arith.constant 0 : i32
    return %arg0, %c0_i32 : i32, i32
  }
  func.func @transform_2(%arg0: i32) -> (i32, i32, i32) {
    %c0_i32 = arith.constant 0 : i32
    %c0_i32_0 = arith.constant 0 : i32
    %c0_i32_1 = arith.constant 0 : i32
    return %arg0, %c0_i32, %c0_i32_0 : i32, i32, i32
  }
  func.func @transform_3(%arg0: i32) -> (i32, i32) {
    %c0_i32 = arith.constant 0 : i32
    %c0_i32_0 = arith.constant 0 : i32
    return %arg0, %c0_i32 : i32, i32
  }
}

</mosaic_0001>

<llo_original>
// kernel: asm2vec_forward.1
$region0: #{asm2vec_forward.1}
  #allocation0 [shape = 'u32[]', space=smem, size = 0x4, offset = 0x4, fixed_abs, tag = 'smem constant byte address 0x4 - core index']
  #allocation1 [shape = 'u32[144,128]{1,0:T(1,128)}', space=vmem, size = 0x12000, scoped, tag = 'internal scratch']
  %s0 = inlined_call_operand.vmem [shape: f32[8,512], index: 0, kind: input, shape index: {}]
  %s1 = inlined_call_operand.vmem [shape: f32[8,128], index: 1, kind: input, shape index: {}]
  %s2 = inlined_call_operand.vmem [shape: f32[8,8,128], index: 2, kind: input, shape index: {}]
  %s3 = inlined_call_operand.vmem [shape: f32[1,128], index: 3, kind: output, shape index: {}]
  %s4 = sld [smem:[#allocation0]]
  $region22: #{asm2vec_forward.1} parent=0
    _
  %s6 = ssub.s32 1, %s4
  %s7 = scalar_select 0, %s6, %s4
  // Predicated region
  $region2: #{asm2vec_forward.1} parent=0 // pred_check
    _
  $region3: #{asm2vec_forward.1} parent=0 // pred_check_branch
    %9 = sbr.rel (0) target = $region5
  $region4: #{asm2vec_forward.1} parent=0 // pred_region
    _
  $region5: #{asm2vec_forward.1} parent=0 // pred_fallthru
    _
  // Predicated region
  $region6: #{asm2vec_forward.1} parent=0 // pred_check
    _
  $region7: #{asm2vec_forward.1} parent=0 // pred_check_branch
    %11 = sbr.rel (0) target = $region9
  $region8: #{asm2vec_forward.1} parent=0 // pred_region
    _
  $region9: #{asm2vec_forward.1} parent=0 // pred_fallthru
    _
  // Predicated region
  $region10: #{asm2vec_forward.1} parent=0 // pred_check
    _
  $region11: #{asm2vec_forward.1} parent=0 // pred_check_branch
    %13 = sbr.rel (0) target = $region13
  $region12: #{asm2vec_forward.1} parent=0 // pred_region
    _
  $region13: #{asm2vec_forward.1} parent=0 // pred_fallthru
    _
  %v14 = vld [vmem:[%s0] sm:$0xff]
  %v15 = vld [vmem:[%s0 + $0x8] sm:$0xff]
  %v16 = vld [vmem:[%s0 + $0x10] sm:$0xff]
  %v17 = vld [vmem:[%s0 + $0x18] sm:$0xff]
  %v18 = vadd.f32 %v14, %v15
  %v19 = vadd.f32 %v18, %v16
  %v20 = vadd.f32 %v19, %v17
  %v21 = vmul.f32 %v20, 0.5
  %v22 = vld [vmem:[%s1] sm:$0xff]
  %v23 = vadd.f32 %v22, %v21
  %v24 = vmul.f32 %v23, 0.33333334
  %v25 = vld [vmem:[%s2] sm:$0xff]
  %v26 = vld [vmem:[%s2 + $0x8] sm:$0xff]
  %v27 = vld [vmem:[%s2 + $0x10] sm:$0xff]
  %v28 = vld [vmem:[%s2 + $0x18] sm:$0xff]
  %v29 = vld [vmem:[%s2 + $0x20] sm:$0xff]
  %v30 = vld [vmem:[%s2 + $0x28] sm:$0xff]
  %v31 = vld [vmem:[%s2 + $0x30] sm:$0xff]
  %v32 = vld [vmem:[%s2 + $0x38] sm:$0xff]
  %v34 = vcombine.high %v24, %v24
  %v36 = vunpack.c.l.s4 1966171168
  %v37 = vunpack.c.0.s8 %v36
  %v38 = vlaneseq
  %v39 = vshrl.u32 %v38, 7
  %v40 = vsub.s32 %v37, %v39
  %v41 = vrot.slane %v24, %v40
  %v43 = vunpack.c.l.s4 1966171168
  %v44 = vunpack.c.0.s8 %v43
  %v45 = vlaneseq
  %v46 = vshrl.u32 %v45, 7
  %v47 = vsub.s32 %v44, %v46
  %v48 = vrot.slane %v34, %v47
  %v49 = vcombine.high %v41, %v41
  %v50 = vcombine.high %v48, %v48
  %v52 = vunpack.c.l.s4 1966171168
  %v53 = vunpack.c.0.s8 %v52
  %v54 = vlaneseq
  %v55 = vshrl.u32 %v54, 7
  %v56 = vsub.s32 %v53, %v55
  %v57 = vrot.slane %v41, %v56
  %v59 = vunpack.c.l.s4 1966171168
  %v60 = vunpack.c.0.s8 %v59
  %v61 = vlaneseq
  %v62 = vshrl.u32 %v61, 7
  %v63 = vsub.s32 %v60, %v62
  %v64 = vrot.slane %v48, %v63
  %v66 = vunpack.c.l.s4 1966171168
  %v67 = vunpack.c.0.s8 %v66
  %v68 = vlaneseq
  %v69 = vshrl.u32 %v68, 7
  %v70 = vsub.s32 %v67, %v69
  %v71 = vrot.slane %v49, %v70
  %v73 = vunpack.c.l.s4 1966171168
  %v74 = vunpack.c.0.s8 %v73
  %v75 = vlaneseq
  %v76 = vshrl.u32 %v75, 7
  %v77 = vsub.s32 %v74, %v76
  %v78 = vrot.slane %v50, %v77
  %v79 = vcombine.high %v57, %v57
  %v80 = vcombine.high %v64, %v64
  %v81 = vcombine.high %v71, %v71
  %v82 = vcombine.high %v78, %v78
  %v83 = vlaneseq
  %v84 = vshrl.u32 %v83, 7
  %v85 = vsub.s32 0, %v84
  %v86 = vrot.slane %v57, %v85
  %v87 = vlaneseq
  %v88 = vshrl.u32 %v87, 7
  %v89 = vsub.s32 0, %v88
  %v90 = vrot.slane %v71, %v89
  %v91 = vlaneseq
  %v92 = vshrl.u32 %v91, 7
  %v93 = vsub.s32 0, %v92
  %v94 = vrot.slane %v79, %v93
  %v95 = vlaneseq
  %v96 = vshrl.u32 %v95, 7
  %v97 = vsub.s32 0, %v96
  %v98 = vrot.slane %v81, %v97
  %v99 = vlaneseq
  %v100 = vshrl.u32 %v99, 7
  %v101 = vsub.s32 0, %v100
  %v102 = vrot.slane %v64, %v101
  %v103 = vlaneseq
  %v104 = vshrl.u32 %v103, 7
  %v105 = vsub.s32 0, %v104
  %v106 = vrot.slane %v78, %v105
  %v107 = vlaneseq
  %v108 = vshrl.u32 %v107, 7
  %v109 = vsub.s32 0, %v108
  %v110 = vrot.slane %v80, %v109
  %v111 = vlaneseq
  %v112 = vshrl.u32 %v111, 7
  %v113 = vsub.s32 0, %v112
  %v114 = vrot.slane %v82, %v113
  %v123 = vmul.f32 %v25, %v86
  %v124 = vmul.f32 %v26, %v90
  %v125 = vmul.f32 %v27, %v94
  %v126 = vmul.f32 %v28, %v98
  %v127 = vmul.f32 %v29, %v102
  %v128 = vmul.f32 %v30, %v106
  %v129 = vmul.f32 %v31, %v110
  %v130 = vmul.f32 %v32, %v114
  %131 = vadd.xlane.f32.xlu0 %v123
  %v132 = vpop.xlane.xlu0 %131
  %133 = vadd.xlane.f32.xlu0 %v124
  %v134 = vpop.xlane.xlu0 %133
  %135 = vadd.xlane.f32.xlu0 %v125
  %v136 = vpop.xlane.xlu0 %135
  %137 = vadd.xlane.f32.xlu0 %v126
  %v138 = vpop.xlane.xlu0 %137
  %139 = vadd.xlane.f32.xlu0 %v127
  %v140 = vpop.xlane.xlu0 %139
  %141 = vadd.xlane.f32.xlu0 %v128
  %v142 = vpop.xlane.xlu0 %141
  %143 = vadd.xlane.f32.xlu0 %v129
  %v144 = vpop.xlane.xlu0 %143
  %145 = vadd.xlane.f32.xlu0 %v130
  %v146 = vpop.xlane.xlu0 %145
  %v147 = vmax.f32 %v132, 0.0
  %v148 = vmax.f32 %v134, 0.0
  %v149 = vmax.f32 %v136, 0.0
  %v150 = vmax.f32 %v138, 0.0
  %v151 = vmax.f32 %v140, 0.0
  %v152 = vmax.f32 %v142, 0.0
  %v153 = vmax.f32 %v144, 0.0
  %v154 = vmax.f32 %v146, 0.0
  %v155 = vand.u32 2147483647, %v132
  %v156 = vand.u32 2147483647, %v134
  %v157 = vand.u32 2147483647, %v136
  %v158 = vand.u32 2147483647, %v138
  %v159 = vand.u32 2147483647, %v140
  %v160 = vand.u32 2147483647, %v142
  %v161 = vand.u32 2147483647, %v144
  %v162 = vand.u32 2147483647, %v146
  %v163 = vsub.f32 0.0, %v155
  %v164 = vsub.f32 0.0, %v156
  %v165 = vsub.f32 0.0, %v157
  %v166 = vsub.f32 0.0, %v158
  %v167 = vsub.f32 0.0, %v159
  %v168 = vsub.f32 0.0, %v160
  %v169 = vsub.f32 0.0, %v161
  %v170 = vsub.f32 0.0, %v162
  %v171 = vmul.f32 %v163, 1.442695
  %v172 = vpow.pop %v171
  %v173 = vmul.f32 %v164, 1.442695
  %v174 = vpow.pop %v173
  %v175 = vmul.f32 %v165, 1.442695
  %v176 = vpow.pop %v175
  %v177 = vmul.f32 %v166, 1.442695
  %v178 = vpow.pop %v177
  %v179 = vmul.f32 %v167, 1.442695
  %v180 = vpow.pop %v179
  %v181 = vmul.f32 %v168, 1.442695
  %v182 = vpow.pop %v181
  %v183 = vmul.f32 %v169, 1.442695
  %v184 = vpow.pop %v183
  %v185 = vmul.f32 %v170, 1.442695
  %v186 = vpow.pop %v185
  %v187 = vadd.f32 %v172, 1.0
  %v188 = vadd.f32 %v174, 1.0
  %v189 = vadd.f32 %v176, 1.0
  %v190 = vadd.f32 %v178, 1.0
  %v191 = vadd.f32 %v180, 1.0
  %v192 = vadd.f32 %v182, 1.0
  %v193 = vadd.f32 %v184, 1.0
  %v194 = vadd.f32 %v186, 1.0
  %v195 = vlog2.pop %v187
  %v196 = vmul.f32 %v195, 0.6931472
  %v197 = vlog2.pop %v188
  %v198 = vmul.f32 %v197, 0.6931472
  %v199 = vlog2.pop %v189
  %v200 = vmul.f32 %v199, 0.6931472
  %v201 = vlog2.pop %v190
  %v202 = vmul.f32 %v201, 0.6931472
  %v203 = vlog2.pop %v191
  %v204 = vmul.f32 %v203, 0.6931472
  %v205 = vlog2.pop %v192
  %v206 = vmul.f32 %v205, 0.6931472
  %v207 = vlog2.pop %v193
  %v208 = vmul.f32 %v207, 0.6931472
  %v209 = vlog2.pop %v194
  %v210 = vmul.f32 %v209, 0.6931472
  %v211 = vadd.f32 %v147, %v196
  %v212 = vadd.f32 %v148, %v198
  %v213 = vadd.f32 %v149, %v200
  %v214 = vadd.f32 %v150, %v202
  %v215 = vadd.f32 %v151, %v204
  %v216 = vadd.f32 %v152, %v206
  %v217 = vadd.f32 %v153, %v208
  %v218 = vadd.f32 %v154, %v210
  %v227 = vlaneseq
  %v228 = vand.u32 %v227, 127
  %v229 = vlaneseq
  %v230 = vshrl.u32 %v229, 7
  %v231 = vsub.s32 %v228, %v230
  %v232 = vrot.slane %v211, %v231
  %v233 = vlaneseq
  %v234 = vshrl.u32 %v233, 7
  %v235 = vsub.s32 %v228, %v234
  %v236 = vrot.slane %v212, %v235
  %v237 = vlaneseq
  %v238 = vshrl.u32 %v237, 7
  %v239 = vsub.s32 %v228, %v238
  %v240 = vrot.slane %v213, %v239
  %v241 = vlaneseq
  %v242 = vshrl.u32 %v241, 7
  %v243 = vsub.s32 %v228, %v242
  %v244 = vrot.slane %v214, %v243
  %v245 = vlaneseq
  %v246 = vshrl.u32 %v245, 7
  %v247 = vsub.s32 %v228, %v246
  %v248 = vrot.slane %v215, %v247
  %v249 = vlaneseq
  %v250 = vshrl.u32 %v249, 7
  %v251 = vsub.s32 %v228, %v250
  %v252 = vrot.slane %v216, %v251
  %v253 = vlaneseq
  %v254 = vshrl.u32 %v253, 7
  %v255 = vsub.s32 %v228, %v254
  %v256 = vrot.slane %v217, %v255
  %v257 = vlaneseq
  %v258 = vshrl.u32 %v257, 7
  %v259 = vsub.s32 %v228, %v258
  %v260 = vrot.slane %v218, %v259
  %vm261 = vcmask 1041409
  %v262 = vsel %vm261, %v236, %v232
  %vm263 = vcmask 1042434
  %v264 = vsel %vm263, %v240, %v262
  %vm265 = vcmask 1043459
  %v266 = vsel %vm265, %v244, %v264
  %vm267 = vcmask 1044484
  %v268 = vsel %vm267, %v248, %v266
  %vm269 = vcmask 1045509
  %v270 = vsel %vm269, %v252, %v268
  %vm271 = vcmask 1046534
  %v272 = vsel %vm271, %v256, %v270
  %vm273 = vcmask 1047559
  %v274 = vsel %vm273, %v260, %v272
  %vm276 = vcmask 64512
  %v277 = vsel %vm276, %v274, 0.0
  %278 = vadd.xlane.f32.xlu0 %v277
  %v279 = vpop.xlane.xlu0 %278
  %v288 = vrot.slane %v134, 7
  %v289 = vsel %vm261, %v288, %v132
  %v290 = vrot.slane %v136, 6
  %v291 = vsel %vm263, %v290, %v289
  %v292 = vrot.slane %v138, 5
  %v293 = vsel %vm265, %v292, %v291
  %v294 = vrot.slane %v140, 4
  %v295 = vsel %vm267, %v294, %v293
  %v296 = vrot.slane %v142, 3
  %v297 = vsel %vm269, %v296, %v295
  %v298 = vrot.slane %v144, 2
  %v299 = vsel %vm271, %v298, %v297
  %v300 = vrot.slane %v146, 1
  %v301 = vsel %vm273, %v300, %v299
  %v303 = vsub.f32 %v279, %v301
  %v304 = vlaneseq
  %v305 = vshrl.u32 %v304, 7
  %s306 = smul.u32 0, 8
  %v307 = vstv %s306
  %v308 = vadd.s32 %v305, %v307
  %vm309 = vcmp.lt.s32.totalorder %v308, 8
  %v310 = vsel %vm309, 1, 0
  %v311 = vcvt.s32.f32 %v310
  %v312 = vmul.f32 %v303, %v311
  %vm313 = vcmask 7168
  %v314 = vsel %vm313, %v312, 0.0
  %v315 = vrot.slane %v314, 4
  %v316 = vadd.f32 %v314, %v315
  %v317 = vrot.slane %v316, 2
  %v318 = vadd.f32 %v316, %v317
  %v319 = vrot.slane %v318, 1
  %v320 = vadd.f32 %v318, %v319
  %322 = vset.pattern.permute.xlu0 0
  %323 = vperm.xlu0 %322, %v320
  %v324 = vpop.permute.xlu0 %323
  %326 = vst [vmem:[%s3] sm:$0x1] %v324
  // Predicated region
  $region14: #{asm2vec_forward.1} parent=0 // pred_check
    _
  $region15: #{asm2vec_forward.1} parent=0 // pred_check_branch
    %328 = sbr.rel (0) target = $region17
  $region16: #{asm2vec_forward.1} parent=0 // pred_region
    _
  $region17: #{asm2vec_forward.1} parent=0 // pred_fallthru
    _
  // Predicated region
  $region18: #{asm2vec_forward.1} parent=0 // pred_check
    _
  $region19: #{asm2vec_forward.1} parent=0 // pred_check_branch
    %330 = sbr.rel (0) target = $region21
  $region20: #{asm2vec_forward.1} parent=0 // pred_region
    _
  $region21: #{asm2vec_forward.1} parent=0 // pred_fallthru
    _

</llo_original>
